<compile_context>
chip_gen: v5e
topology: v5e:2x2
jax: 0.10.0
libtpu: 0.0.40
codegen_flags: <defaults>
</compile_context>

<pallas_src>
import functools

import jax
import jax.numpy as jnp
import numpy as np
from jax.experimental import pallas as pl
from jax.experimental.pallas import tpu as pltpu


# ----------------------------------------------------------------------------- kernel
def _mlp_kernel(x_ref, w1_ref, b1_ref, w2_ref, b2_ref, o_ref, *,
                sp_cols, tile_n, num_slabs, mxu_dtype):
    """One out_dim slab: (actnorm-folded) masked MLP + region-gated softplus.

    The first (D x HID) matmul is recomputed per slab — at these sizes that is a
    few hundred KFLOPs and avoids a cross-step accumulator, keeping the grid axis
    fully parallel (v7x 2-TC shardable).
    """
    x = x_ref[...]
    w1 = w1_ref[...]
    if mxu_dtype is not None:          # optional bf16 MXU operands (v5e MXU is bf16-native)
        x = x.astype(mxu_dtype)
        w1 = w1.astype(mxu_dtype)
    h = jnp.dot(x, w1, preferred_element_type=jnp.float32)
    h = jnp.maximum(h + b1_ref[...], 0.0)                                   # ReLU
    out = jnp.dot(h.astype(w2_ref.dtype), w2_ref[...],
                  preferred_element_type=jnp.float32) + b2_ref[...]

    def _softplus(v):
        return jnp.maximum(v, 0.0) + jnp.log1p(jnp.exp(-jnp.abs(v)))

    # Softplus region = flat output columns [0, sp_cols).  All boundaries below are
    # static Python ints; per-slab gating is a cheap pl.when on the slab index.
    full = sp_cols // tile_n            # slabs entirely inside the softplus region
    rem = sp_cols - full * tile_n       # lane-aligned partial boundary inside slab `full`
    j = pl.program_id(0)

    def _store_all_softplus():
        o_ref[...] = _softplus(out)

    def _store_partial():
        o_ref[:, :rem] = _softplus(out[:, :rem])
        o_ref[:, rem:] = out[:, rem:]

    def _store_copy():
        o_ref[...] = out

    if full == 0 and rem == 0:          # no softplus region at all
        _store_copy()
    elif num_slabs == 1:                # single slab: purely static gate
        if rem > 0:
            _store_partial()
        else:
            _store_all_softplus()
    else:
        if full > 0:
            @pl.when(j < full)
            def _():
                _store_all_softplus()
        if rem > 0:
            @pl.when(j == full)
            def _():
                _store_partial()
        boundary = full + (1 if rem > 0 else 0)
        if boundary < num_slabs:
            @pl.when(j >= boundary)
            def _():
                _store_copy()


# ----------------------------------------------------------------------------- wrapper
def fold_actnorm_params(params, *, w2_dtype=jnp.bfloat16):
    """Fold pointwise actnorm (y = x*exp(log_scale)+bias) into the first masked layer.

    Call ONCE per parameter set (outside the hot path) and reuse the result:
      W1' = diag(exp(log_scale)) @ W1,   b1' = b1 + bias @ W1.
    W2 is cast to `w2_dtype` (bf16 by default: halves the dominant HBM stream and
    makes the second matmul single-pass bf16 on the MXU; use float32 for exact
    1e-5 parity with the f32 PyTorch module).
    """
    log_scale, norm_bias, w1m, b1, w2m, b2 = params
    D = w1m.shape[0]
    scale = jnp.exp(log_scale).reshape(D)
    shift = norm_bias.reshape(D)
    w1f = (w1m * scale[:, None]).astype(jnp.float32)
    b1f = (b1 + shift @ w1m).astype(jnp.float32)
    w2c = w2m.astype(w2_dtype)
    b2c = b2.astype(jnp.float32)
    return w1f, b1f, w2c, b2c


def _choose_num_slabs(out_dim, hid, b_pad, d, w2_itemsize, vmem_budget_bytes=12 << 20):
    """Pick the out_dim split: prefer 2 slabs (v7x dual-TC + DMA/compute overlap),
    grow only if a slab would exceed a conservative scoped-VMEM budget (safe on
    v5e 16 MiB / v6e 32 MiB / v7x 32 MiB default scoped limits)."""
    def aligned(ns):
        return out_dim % ns == 0 and (out_dim // ns) % 128 == 0

    def slab_bytes(ns):
        tn = out_dim // ns
        fixed = (b_pad * d + d * hid + hid) * 4                       # x, W1, b1 (f32)
        per = hid * tn * w2_itemsize + tn * 4 + b_pad * tn * 4        # W2, b2, out slab
        return 2 * (fixed + per)                                      # conservative 2x buffering

    ns = 2 if aligned(2) else 1
    while slab_bytes(ns) > vmem_budget_bytes and aligned(ns * 2):
        ns *= 2
    return ns


def masked_mlp_conditioner(x, folded_params, *, embed_dim, mxu_dtype=None):
    """Forward pass of MaskedMLPConditioner.

    `folded_params` must come from fold_actnorm_params() (computed once, reused).
    For best throughput, stack multiple flow steps / samples into the batch dim of
    a single call rather than calling per-sample (amortizes the W2 stream and the
    fixed per-call cost).
    """
    B, C, H, W = x.shape
    D = C * H * W
    E = embed_dim
    w1f, b1f, w2c, b2c = folded_params
    HID = w1f.shape[1]
    out_dim = w2c.shape[1]
    sp_cols = E * D
    assert out_dim == 3 * D * E + 2 * D
    # Static-slice softplus gate assumes a lane-aligned boundary.
    assert sp_cols % 128 == 0, "E*D must be a multiple of 128 for the static softplus gate"

    # Pad batch to a full 8-sublane tile so VPU/EUP work and output vst are dense.
    B_pad = ((B + 7) // 8) * 8
    x_flat = x.reshape(B, D).astype(jnp.float32)      # row-major == torch.flatten(-3)
    x_pad = jnp.pad(x_flat, ((0, B_pad - B), (0, 0)))

    w2_itemsize = jnp.dtype(w2c.dtype).itemsize
    num_slabs = _choose_num_slabs(out_dim, HID, B_pad, D, w2_itemsize)
    tile_n = out_dim // num_slabs

    cost = pl.CostEstimate(
        flops=2 * B_pad * D * HID * num_slabs + 2 * B_pad * HID * out_dim,
        transcendentals=2 * B_pad * sp_cols,                 # exp + log1p per softplus elem
        bytes_accessed=(B_pad * D + D * HID + HID + out_dim) * 4
                       + HID * out_dim * w2_itemsize
                       + B_pad * out_dim * 4,
    )

    kernel = functools.partial(_mlp_kernel, sp_cols=sp_cols, tile_n=tile_n,
                               num_slabs=num_slabs, mxu_dtype=mxu_dtype)
    out = pl.pallas_call(
        kernel,
        out_shape=jax.ShapeDtypeStruct((B_pad, out_dim), jnp.float32),
        grid=(num_slabs,),
        in_specs=[
            pl.BlockSpec((B_pad, D), lambda j: (0, 0)),       # x (actnorm folded away)
            pl.BlockSpec((D, HID), lambda j: (0, 0)),         # masked W1 (actnorm-scaled)
            pl.BlockSpec((1, HID), lambda j: (0, 0)),         # b1'
            pl.BlockSpec((HID, tile_n), lambda j: (0, j)),    # masked W2 slab
            pl.BlockSpec((1, tile_n), lambda j: (0, j)),      # b2 slab
        ],
        out_specs=pl.BlockSpec((B_pad, tile_n), lambda j: (0, j)),
        compiler_params=pltpu.CompilerParams(dimension_semantics=("parallel",)),
        cost_estimate=cost,
    )(x_pad, w1f, b1f, w2c, b2c)
    out = out[:B]

    # --- glue: mirrors the PyTorch reshape / transpose / unbind exactly (left to XLA
    #     on purpose: in-kernel de-interleave would force last-dim-3E masked stores) ---
    w_part = out[:, :3 * D * E].reshape(B, 3 * E, D)
    w_part = jnp.transpose(w_part, (0, 2, 1)).reshape(B, C, H, W, 3, E)
    in_proj_weight = w_part[..., 0, :]   # softplus already applied in-kernel
    in_proj_bias = w_part[..., 1, :]
    out_proj_weight = w_part[..., 2, :]
    tail = out[:, 3 * D * E:].reshape(B, 2, C, H, W)
    out_proj_bias = tail[:, 0]
    residual_weight = tail[:, 1]
    return in_proj_weight, in_proj_bias, out_proj_weight, out_proj_bias, residual_weight


# ----------------------------------------------------------------------------- params & reference
def init_params(key, c, h, w, embed_dim, hid=128):
    D = c * h * w
    out_dim = 3 * D * embed_dim + 2 * D
    k = jax.random.split(key, 6)

    # TODO(synk): MaskedLinear source not provided; assumed standard MADE masks
    # (>= for input/hidden layer, strict > for output layer, output degrees tiled
    # over flow dims to match the (..., -1, flow_dim) reshape in forward()).
    deg_in = jnp.arange(1, D + 1)
    deg_hid = (jnp.arange(hid) % max(D - 1, 1)) + 1
    mask1 = (deg_hid[None, :] >= deg_in[:, None]).astype(jnp.float32)          # (D, hid)
    deg_out = jnp.tile(deg_in, 3 * embed_dim + 2)
    mask2 = (deg_out[None, :] > deg_hid[:, None]).astype(jnp.float32)          # (hid, out_dim)

    w1 = jax.random.normal(k[0], (D, hid), jnp.float32) / np.sqrt(D)
    b1 = 0.01 * jax.random.normal(k[1], (1, hid), jnp.float32)
    w2 = jax.random.normal(k[2], (hid, out_dim), jnp.float32) / np.sqrt(hid)
    b2 = 0.01 * jax.random.normal(k[3], (1, out_dim), jnp.float32)

    # TODO(synk): PointwiseActNorm source not provided; assumed per-(c,h,w) affine
    # y = x * exp(log_scale) + bias with deterministically initialized parameters.
    log_scale = 0.1 * jax.random.normal(k[4], (c, h, w), jnp.float32)
    norm_bias = 0.1 * jax.random.normal(k[5], (c, h, w), jnp.float32)

    return (log_scale, norm_bias, w1 * mask1, b1, w2 * mask2, b2)


def reference(x, params, embed_dim):
    """Pure-JAX reference reproducing the PyTorch forward semantics."""
    B, C, H, W = x.shape
    D = C * H * W
    E = embed_dim
    log_scale, norm_bias, w1m, b1, w2m, b2 = params
    xn = x * jnp.exp(log_scale)[None] + norm_bias[None]
    xf = xn.reshape(B, D)
    h = jnp.maximum(xf @ w1m + b1, 0.0)
    out = h @ w2m + b2
    w_part = out[:, :3 * D * E].reshape(B, 3 * E, D)
    w_part = jnp.transpose(w_part, (0, 2, 1)).reshape(B, C, H, W, 3, E)
    ipw = jax.nn.softplus(w_part[..., 0, :])
    ipb = w_part[..., 1, :]
    opw = w_part[..., 2, :]
    tail = out[:, 3 * D * E:].reshape(B, 2, C, H, W)
    return ipw, ipb, opw, tail[:, 0], tail[:, 1]


if __name__ == "__main__":
    B, C, H, W, E = 2, 4, 8, 8, 2           # flow_dim = 256, out_dim = 2048, sp_cols = 512
    key = jax.random.PRNGKey(0)
    kx, kp = jax.random.split(key)
    x = jax.random.normal(kx, (B, C, H, W), jnp.float32)
    params = init_params(kp, C, H, W, E, hid=128)

    refs = reference(x, params, E)
    names = ["in_proj_weight", "in_proj_bias", "out_proj_weight",
             "out_proj_bias", "residual_weight"]

    # --- exact-parity path: f32 weights end-to-end, 1e-5 vs the PyTorch-equivalent ref
    folded_f32 = fold_actnorm_params(params, w2_dtype=jnp.float32)   # do ONCE, reuse
    outs = jax.block_until_ready(masked_mlp_conditioner(x, folded_f32, embed_dim=E))
    for name, a, b in zip(names, outs, refs):
        assert a.shape == b.shape, (name, a.shape, b.shape)
        np.testing.assert_allclose(np.asarray(a), np.asarray(b),
                                   rtol=1e-5, atol=1e-5, err_msg=name)

    # --- default fast path: bf16 W2 stream (+ bf16 MXU operands), f32 accumulation
    folded = fold_actnorm_params(params)                             # w2 in bf16
    outs_fast = jax.block_until_ready(
        masked_mlp_conditioner(x, folded, embed_dim=E, mxu_dtype=jnp.bfloat16))
    for name, a, b in zip(names, outs_fast, refs):
        assert a.shape == b.shape, (name, a.shape, b.shape)
        np.testing.assert_allclose(np.asarray(a), np.asarray(b),
                                   rtol=5e-2, atol=5e-2, err_msg=name)

    print("KERNEL_OK")
</pallas_src>

<mosaic_0001>
module attributes {stable_mosaic.version = 11 : i64} {
  func.func @_mlp_kernel(%arg0: i32, %arg1: memref<8x256xf32, #tpu.memory_space<vmem>>, %arg2: memref<256x128xf32, #tpu.memory_space<vmem>>, %arg3: memref<1x128xf32, #tpu.memory_space<vmem>>, %arg4: memref<128x1024xf32, #tpu.memory_space<vmem>>, %arg5: memref<1x1024xf32, #tpu.memory_space<vmem>>, %arg6: memref<8x1024xf32, #tpu.memory_space<vmem>>) attributes {dimension_semantics = [#tpu.dimension_semantics<parallel>], iteration_bounds = array<i64: 2>, scalar_prefetch = 0 : i64, scratch_operands = 0 : i64, tpu.core_type = #tpu.core_type<tc>, window_params = [{pipeline_mode = #tpu.pipeline_mode<synchronous>, transform_indices = @transform_0, window_bounds = array<i64: 8, 256>}, {pipeline_mode = #tpu.pipeline_mode<synchronous>, transform_indices = @transform_1, window_bounds = array<i64: 256, 128>}, {pipeline_mode = #tpu.pipeline_mode<synchronous>, transform_indices = @transform_2, window_bounds = array<i64: 1, 128>}, {transform_indices = @transform_3, window_bounds = array<i64: 128, 1024>}, {transform_indices = @transform_4, window_bounds = array<i64: 1, 1024>}, {transform_indices = @transform_5, window_bounds = array<i64: 8, 1024>}]} {
    %c0 = arith.constant 0 : index
    %c0_0 = arith.constant 0 : index
    %0 = vector.load %arg1[%c0, %c0_0] : memref<8x256xf32, #tpu.memory_space<vmem>>, vector<8x256xf32>
    %c0_1 = arith.constant 0 : index
    %c0_2 = arith.constant 0 : index
    %1 = vector.load %arg2[%c0_1, %c0_2] : memref<256x128xf32, #tpu.memory_space<vmem>>, vector<256x128xf32>
    %cst = arith.constant dense<0.000000e+00> : vector<8x128xf32>
    %2 = tpu.matmul %0, %1, %cst {dimension_numbers = #tpu.dot_dimension_numbers<[1], [0], [0], [1], [0, 0, 1, 1], [], []>} : vector<8x256xf32>, vector<256x128xf32>, vector<8x128xf32> -> vector<8x128xf32>
    %c0_3 = arith.constant 0 : index
    %c0_4 = arith.constant 0 : index
    %3 = vector.load %arg3[%c0_3, %c0_4] : memref<1x128xf32, #tpu.memory_space<vmem>>, vector<1x128xf32>
    %4 = vector.broadcast %3 : vector<1x128xf32> to vector<8x128xf32>
    %5 = arith.addf %2, %4 : vector<8x128xf32>
    %cst_5 = arith.constant 0.000000e+00 : f32
    %6 = vector.broadcast %cst_5 : f32 to vector<8x128xf32>
    %7 = arith.maximumf %5, %6 : vector<8x128xf32>
    %c0_6 = arith.constant 0 : index
    %c0_7 = arith.constant 0 : index
    %8 = vector.load %arg4[%c0_6, %c0_7] : memref<128x1024xf32, #tpu.memory_space<vmem>>, vector<128x1024xf32>
    %cst_8 = arith.constant dense<0.000000e+00> : vector<8x1024xf32>
    %9 = tpu.matmul %7, %8, %cst_8 {dimension_numbers = #tpu.dot_dimension_numbers<[1], [0], [0], [1], [0, 0, 1, 1], [], []>} : vector<8x128xf32>, vector<128x1024xf32>, vector<8x1024xf32> -> vector<8x1024xf32>
    %c0_9 = arith.constant 0 : index
    %c0_10 = arith.constant 0 : index
    %10 = vector.load %arg5[%c0_9, %c0_10] : memref<1x1024xf32, #tpu.memory_space<vmem>>, vector<1x1024xf32>
    %11 = vector.broadcast %10 : vector<1x1024xf32> to vector<8x1024xf32>
    %12 = arith.addf %9, %11 : vector<8x1024xf32>
    %c0_i32 = arith.constant 0 : i32
    %13 = arith.cmpi eq, %arg0, %c0_i32 : i32
    %14 = arith.extui %13 : i1 to i32
    %c0_i32_11 = arith.constant 0 : i32
    %15 = arith.cmpi ne, %14, %c0_i32_11 : i32
    scf.if %15 {
      %19 = vector.extract_strided_slice %12 {offsets = [0, 0], sizes = [8, 512], strides = [1, 1]} : vector<8x1024xf32> to vector<8x512xf32>
      %cst_13 = arith.constant 0.000000e+00 : f32
      %20 = vector.broadcast %cst_13 : f32 to vector<8x512xf32>
      %21 = arith.maximumf %19, %20 : vector<8x512xf32>
      %22 = math.absf %19 : vector<8x512xf32>
      %cst_14 = arith.constant 0.000000e+00 : f32
      %23 = vector.broadcast %cst_14 : f32 to vector<8x512xf32>
      %24 = arith.subf %23, %22 : vector<8x512xf32>
      %25 = math.exp %24 : vector<8x512xf32>
      %26 = math.log1p %25 : vector<8x512xf32>
      %27 = arith.addf %21, %26 : vector<8x512xf32>
      %c0_15 = arith.constant 0 : index
      %c0_16 = arith.constant 0 : index
      %28 = vector.load %arg6[%c0_15, %c0_16] : memref<8x1024xf32, #tpu.memory_space<vmem>>, vector<8x512xf32>
      tpu.vector_store %arg6[%c0_15, %c0_16], %27 {strides = array<i32>} : memref<8x1024xf32, #tpu.memory_space<vmem>>, vector<8x512xf32>,
      %29 = vector.extract_strided_slice %12 {offsets = [0, 512], sizes = [8, 512], strides = [1, 1]} : vector<8x1024xf32> to vector<8x512xf32>
      %c0_17 = arith.constant 0 : index
      %c512 = arith.constant 512 : index
      %30 = vector.load %arg6[%c0_17, %c512] : memref<8x1024xf32, #tpu.memory_space<vmem>>, vector<8x512xf32>
      tpu.vector_store %arg6[%c0_17, %c512], %29 {strides = array<i32>} : memref<8x1024xf32, #tpu.memory_space<vmem>>, vector<8x512xf32>,
    } else {
    }
    %c1_i32 = arith.constant 1 : i32
    %16 = arith.cmpi sge, %arg0, %c1_i32 : i32
    %17 = arith.extui %16 : i1 to i32
    %c0_i32_12 = arith.constant 0 : i32
    %18 = arith.cmpi ne, %17, %c0_i32_12 : i32
    scf.if %18 {
      %c0_13 = arith.constant 0 : index
      %c0_14 = arith.constant 0 : index
      %19 = vector.load %arg6[%c0_13, %c0_14] : memref<8x1024xf32, #tpu.memory_space<vmem>>, vector<8x1024xf32>
      tpu.vector_store %arg6[%c0_13, %c0_14], %12 {strides = array<i32>} : memref<8x1024xf32, #tpu.memory_space<vmem>>, vector<8x1024xf32>,
    } else {
    }
    return
  }
  func.func @transform_0(%arg0: i32) -> (i32, i32) {
    %c0_i32 = arith.constant 0 : i32
    %c0_i32_0 = arith.constant 0 : i32
    %c0_i32_1 = arith.constant 0 : i32
    return %c0_i32, %c0_i32_0 : i32, i32
  }
  func.func @transform_1(%arg0: i32) -> (i32, i32) {
    %c0_i32 = arith.constant 0 : i32
    %c0_i32_0 = arith.constant 0 : i32
    %c0_i32_1 = arith.constant 0 : i32
    return %c0_i32, %c0_i32_0 : i32, i32
  }
  func.func @transform_2(%arg0: i32) -> (i32, i32) {
    %c0_i32 = arith.constant 0 : i32
    %c0_i32_0 = arith.constant 0 : i32
    %c0_i32_1 = arith.constant 0 : i32
    return %c0_i32, %c0_i32_0 : i32, i32
  }
  func.func @transform_3(%arg0: i32) -> (i32, i32) {
    %c0_i32 = arith.constant 0 : i32
    %c0_i32_0 = arith.constant 0 : i32
    return %c0_i32, %arg0 : i32, i32
  }
  func.func @transform_4(%arg0: i32) -> (i32, i32) {
    %c0_i32 = arith.constant 0 : i32
    %c0_i32_0 = arith.constant 0 : i32
    return %c0_i32, %arg0 : i32, i32
  }
  func.func @transform_5(%arg0: i32) -> (i32, i32) {
    %c0_i32 = arith.constant 0 : i32
    %c0_i32_0 = arith.constant 0 : i32
    return %c0_i32, %arg0 : i32, i32
  }
}

</mosaic_0001>

<llo_original>
// kernel: tpu_custom_call.1
$region0: #{tpu_custom_call.1}
  #allocation0 [shape = 'u32[]', space=smem, size = 0x4, offset = 0x4, fixed_abs, tag = 'smem constant byte address 0x4 - core index']
  #allocation1 [shape = 'u32[72,128]{1,0:T(1,128)}', space=vmem, size = 0x9000, scoped, tag = 'internal scratch']
  %s0 = inlined_call_operand.hbm [shape: f32[8,256], index: 0, kind: input, shape index: {}]
  %s1 = inlined_call_operand.hbm [shape: f32[256,128], index: 1, kind: input, shape index: {}]
  %s2 = inlined_call_operand.vmem [shape: f32[1,128], index: 2, kind: input, shape index: {}]
  %s3 = inlined_call_operand.hbm [shape: f32[128,2048], index: 3, kind: input, shape index: {}]
  %s4 = inlined_call_operand.hbm [shape: f32[1,2048], index: 4, kind: input, shape index: {}]
  %s5 = inlined_call_operand.hbm [shape: f32[8,2048], index: 5, kind: output, shape index: {}]
  %s6 = sld [smem:[#allocation0]]
  $region77: #{tpu_custom_call.1} parent=0
    _
  %s8 = ssub.s32 1, %s6
  %s9 = scalar_select 0, %s8, %s6
  $region1: #{tpu_custom_call.1} parent=0
    #allocation2 [shape = 'u8[8192]{0}', space=vmem, size = 0x2000, scoped, tag = 'input window, operand 0, single buffered']
    #allocation3 [shape = 's32[2]{0}', space=sflag, size = 0x8, scoped, tag = 'scoped memory for tpu_custom_call.1']
    #allocation4 [shape = 's32[2]{0}', space=sflag, size = 0x8, scoped, tag = 'scoped memory for tpu_custom_call.1']
    #allocation5 [shape = 'u8[131072]{0}', space=vmem, size = 0x20000, scoped, tag = 'input window, operand 1, single buffered']
    #allocation6 [shape = 's32[1]{0}', space=sflag, size = 0x4, scoped, tag = 'scoped memory for tpu_custom_call.1']
    #allocation7 [shape = 'u8[1048576]{0}', space=vmem, size = 0x100000, scoped, tag = 'input window, operand 3']
    #allocation8 [shape = 'u8[8192]{0}', space=vmem, size = 0x2000, scoped, tag = 'input window, operand 4']
    #allocation9 [shape = 'u8[65536]{0}', space=vmem, size = 0x10000, scoped, tag = 'output window, operand 0']
    %10 = vsyncpa [#allocation3], 0
    %11 = vsyncpa [#allocation6], 0
    %12 = vsyncpa [#allocation4], 0
    %s13 = scalar_lea.sflag [#allocation4], 1
    %14 = vsyncpa %s13, 0
    loop: start=0, step=1, limit=4
    $region2: #{tpu_custom_call.1} parent=1 // loop_pre_header
      _
    $region3: #{tpu_custom_call.1} parent=1 // loop_header
      %s16 = sphi 0, %s20
      %p17 = scmp.ge.s32.totalorder %s16, 4
      %s24 = sphi 0, %s24
      %s26 = sphi 0, %s24
      %s27 = sphi 0, %s26
      %s41 = sphi 0, %s27
      %s45 = sphi 0, %s45
      %s47 = sphi 0, %s45
      %s48 = sphi 0, %s47
      %s62 = sphi 0, %s48
      %s66 = sphi 0, %s66
      %s68 = sphi 0, %s66
      %s69 = sphi 0, %s68
      %s83 = sphi 0, %s69
      %s89 = sphi 0, %s91
      %s92 = sphi 0, %s89
      %s93 = sphi 0, %s92
      %s109 = sphi 0, %s93
      %s115 = sphi 0, %s117
      %s118 = sphi 0, %s115
      %s119 = sphi 0, %s118
      %s135 = sphi 0, %s119
      %s141 = sphi 0, %s143
      %s144 = sphi 0, %s141
      %s145 = sphi 0, %s144
      %s161 = sphi 0, %s145
    $region4: #{tpu_custom_call.1} parent=1 // loop_header_branch
      %19 = sbr.rel (%p17) target = $region8
    $region5: #{tpu_custom_call.1} parent=1 // loop_body
      %s21 = ssub.s32 %s16, 1
      %s22 = ssub.s32 %s16, 2
      %s23 = sadd.s32 %s16, 1
      %s25 = sadd.s32 %s24, 1
      %p28 = scmp.eq.s32.totalorder %s16, 1
      %p29 = scmp.ne.s32.totalorder %s24, %s26
      %p30 = scmp.eq.s32.totalorder %s16, 0
      %p31 = por %p29, %p30
      %p32 = scmp.ne.s32.totalorder %s24, %s26
      %p33 = scmp.eq.s32.totalorder %s21, 1
      %p34 = por %p32, %p33
      %p35 = scmp.ne.s32.totalorder %s26, %s27
      %p36 = scmp.eq.s32.totalorder %s21, 0
      %p37 = por %p35, %p36
      %p38 = scmp.ne.s32.totalorder %s26, %s27
      %p39 = scmp.eq.s32.totalorder %s22, 1
      %p40 = por %p38, %p39
      %p42 = scmp.ne.s32.totalorder %s27, %s41
      %p43 = scmp.eq.s32.totalorder %s22, 0
      %p44 = por %p42, %p43
      %s46 = sadd.s32 %s45, 1
      %p49 = scmp.eq.s32.totalorder %s16, 1
      %p50 = scmp.ne.s32.totalorder %s45, %s47
      %p51 = scmp.eq.s32.totalorder %s16, 0
      %p52 = por %p50, %p51
      %p53 = scmp.ne.s32.totalorder %s45, %s47
      %p54 = scmp.eq.s32.totalorder %s21, 1
      %p55 = por %p53, %p54
      %p56 = scmp.ne.s32.totalorder %s47, %s48
      %p57 = scmp.eq.s32.totalorder %s21, 0
      %p58 = por %p56, %p57
      %p59 = scmp.ne.s32.totalorder %s47, %s48
      %p60 = scmp.eq.s32.totalorder %s22, 1
      %p61 = por %p59, %p60
      %p63 = scmp.ne.s32.totalorder %s48, %s62
      %p64 = scmp.eq.s32.totalorder %s22, 0
      %p65 = por %p63, %p64
      %s67 = sadd.s32 %s66, 1
      %p70 = scmp.eq.s32.totalorder %s16, 1
      %p71 = scmp.ne.s32.totalorder %s66, %s68
      %p72 = scmp.eq.s32.totalorder %s16, 0
      %p73 = por %p71, %p72
      %p74 = scmp.ne.s32.totalorder %s66, %s68
      %p75 = scmp.eq.s32.totalorder %s21, 1
      %p76 = por %p74, %p75
      %p77 = scmp.ne.s32.totalorder %s68, %s69
      %p78 = scmp.eq.s32.totalorder %s21, 0
      %p79 = por %p77, %p78
      %p80 = scmp.ne.s32.totalorder %s68, %s69
      %p81 = scmp.eq.s32.totalorder %s22, 1
      %p82 = por %p80, %p81
      %p84 = scmp.ne.s32.totalorder %s69, %s83
      %p85 = scmp.eq.s32.totalorder %s22, 0
      %p86 = por %p84, %p85
      %s87 = ssub.s32 %s16, %s23
      %p88 = scmp.eq.s32.totalorder %s87, 0
      %s90 = sadd.s32 %s89, 1
      %s91 = scalar_select %p88, %s89, %s90
      %p94 = pneg %p88
      %p95 = scmp.eq.s32.totalorder %s16, 1
      %p96 = por %p94, %p95
      %p97 = scmp.ne.s32.totalorder %s89, %s92
      %p98 = scmp.eq.s32.totalorder %s16, 0
      %p99 = por %p97, %p98
      %p100 = scmp.ne.s32.totalorder %s89, %s92
      %p101 = scmp.eq.s32.totalorder %s21, 1
      %p102 = por %p100, %p101
      %p103 = scmp.ne.s32.totalorder %s92, %s93
      %p104 = scmp.eq.s32.totalorder %s21, 0
      %p105 = por %p103, %p104
      %p106 = scmp.ne.s32.totalorder %s92, %s93
      %p107 = scmp.eq.s32.totalorder %s22, 1
      %p108 = por %p106, %p107
      %p110 = scmp.ne.s32.totalorder %s93, %s109
      %p111 = scmp.eq.s32.totalorder %s22, 0
      %p112 = por %p110, %p111
      %s113 = ssub.s32 %s16, %s23
      %p114 = scmp.eq.s32.totalorder %s113, 0
      %s116 = sadd.s32 %s115, 1
      %s117 = scalar_select %p114, %s115, %s116
      %p120 = pneg %p114
      %p121 = scmp.eq.s32.totalorder %s16, 1
      %p122 = por %p120, %p121
      %p123 = scmp.ne.s32.totalorder %s115, %s118
      %p124 = scmp.eq.s32.totalorder %s16, 0
      %p125 = por %p123, %p124
      %p126 = scmp.ne.s32.totalorder %s115, %s118
      %p127 = scmp.eq.s32.totalorder %s21, 1
      %p128 = por %p126, %p127
      %p129 = scmp.ne.s32.totalorder %s118, %s119
      %p130 = scmp.eq.s32.totalorder %s21, 0
      %p131 = por %p129, %p130
      %p132 = scmp.ne.s32.totalorder %s118, %s119
      %p133 = scmp.eq.s32.totalorder %s22, 1
      %p134 = por %p132, %p133
      %p136 = scmp.ne.s32.totalorder %s119, %s135
      %p137 = scmp.eq.s32.totalorder %s22, 0
      %p138 = por %p136, %p137
      %s139 = ssub.s32 %s16, %s23
      %p140 = scmp.eq.s32.totalorder %s139, 0
      %s142 = sadd.s32 %s141, 1
      %s143 = scalar_select %p140, %s141, %s142
      %p146 = pneg %p140
      %p147 = scmp.eq.s32.totalorder %s16, 1
      %p148 = por %p146, %p147
      %p149 = scmp.ne.s32.totalorder %s141, %s144
      %p150 = scmp.eq.s32.totalorder %s16, 0
      %p151 = por %p149, %p150
      %p152 = scmp.ne.s32.totalorder %s141, %s144
      %p153 = scmp.eq.s32.totalorder %s21, 1
      %p154 = por %p152, %p153
      %p155 = scmp.ne.s32.totalorder %s144, %s145
      %p156 = scmp.eq.s32.totalorder %s21, 0
      %p157 = por %p155, %p156
      %p158 = scmp.ne.s32.totalorder %s144, %s145
      %p159 = scmp.eq.s32.totalorder %s22, 1
      %p160 = por %p158, %p159
      %p162 = scmp.ne.s32.totalorder %s145, %s161
      %p163 = scmp.eq.s32.totalorder %s22, 0
      %p164 = por %p162, %p163
      %p165 = scmp.le.s32.totalorder 1, %s16
      %p166 = scmp.lt.s32.totalorder %s16, 3
      %p167 = pnand %p165, %p166
      %p168 = pneg %p167
      // Predicated region
      $region9: #{tpu_custom_call.1} parent=5 // pred_check
        _
      $region10: #{tpu_custom_call.1} parent=5 // pred_check_branch
        %170 = sbr.rel (%p167) target = $region12
      $region11: #{tpu_custom_call.1} parent=5 // pred_region
        %s171 = ssub.s32 %s16, 1
        // Predicated region
        $region13: #{tpu_custom_call.1} parent=11 // pred_check
          %p172 = pneg %p37
        $region14: #{tpu_custom_call.1} parent=11 // pred_check_branch
          %174 = sbr.rel (%p172) target = $region16
        $region15: #{tpu_custom_call.1} parent=11 // pred_region
          %176 = vsyncadd [#allocation3], 0
          %s178 = sshll.u32 %s0, 4
          %s179 = int_to_ptr.hbm [resolvable:$true] %s178
          %s180 = sshll.u32 [#allocation2], 4
          %s181 = int_to_ptr.vmem [resolvable:$true] %s180
          %183 = dma.hbm_to_vmem [thread:$0]  %s179, 256, %s181, [#allocation3]
        $region16: #{tpu_custom_call.1} parent=11 // pred_fallthru
          _
        // Predicated region
        $region17: #{tpu_custom_call.1} parent=11 // pred_check
          %p184 = pneg %p58
        $region18: #{tpu_custom_call.1} parent=11 // pred_check_branch
          %186 = sbr.rel (%p184) target = $region20
        $region19: #{tpu_custom_call.1} parent=11 // pred_region
          %188 = vsyncadd [#allocation6], 0
          %s189 = sshll.u32 %s1, 4
          %s190 = int_to_ptr.hbm [resolvable:$true] %s189
          %s191 = sshll.u32 [#allocation5], 4
          %s192 = int_to_ptr.vmem [resolvable:$true] %s191
          %197 = dma.hbm_to_vmem [thread:$0]  %s190, 4096, %s192, [#allocation6], 128, 128, 8
        $region20: #{tpu_custom_call.1} parent=11 // pred_fallthru
          _
        // Predicated region
        $region21: #{tpu_custom_call.1} parent=11 // pred_check
          %p198 = pneg %p79
        $region22: #{tpu_custom_call.1} parent=11 // pred_check_branch
          %200 = sbr.rel (%p198) target = $region24
        $region23: #{tpu_custom_call.1} parent=11 // pred_region
          _
        $region24: #{tpu_custom_call.1} parent=11 // pred_fallthru
          _
      $region12: #{tpu_custom_call.1} parent=5 // pred_fallthru
        _
      %p201 = scmp.lt.s32.totalorder %s16, 2
      // Predicated region
      $region25: #{tpu_custom_call.1} parent=5 // pred_check
        %p202 = pneg %p201
      $region26: #{tpu_custom_call.1} parent=5 // pred_check_branch
        %204 = sbr.rel (%p202) target = $region28
      $region27: #{tpu_custom_call.1} parent=5 // pred_region
        // Predicated region
        $region29: #{tpu_custom_call.1} parent=27 // pred_check
          %p205 = pneg %p99
        $region30: #{tpu_custom_call.1} parent=27 // pred_check_branch
          %207 = sbr.rel (%p205) target = $region32
        $region31: #{tpu_custom_call.1} parent=27 // pred_region
          %s208 = sand.u32 %s16, 1
          %s209 = scalar_lea.sflag [#allocation3], %s208
          %s210 = sand.u32 %s89, 1
          %s211 = smul.addr %s210, 1024
          %s212 = scalar_lea.vmem [#allocation7], %s211
          %s213 = smul.u32 8, %s16
          %215 = vsyncadd %s209, 0
          %s216 = smul.addr %s213, 8
          %s217 = scalar_lea.hbm %s3, %s216
          %s218 = sshll.u32 %s217, 4
          %s219 = int_to_ptr.hbm [resolvable:$true] %s218
          %s220 = sshll.u32 %s212, 4
          %s221 = int_to_ptr.vmem [resolvable:$true] %s220
          %226 = dma.hbm_to_vmem [thread:$0]  %s219, 16384, %s221, %s209, 2048, 1024, 64
        $region32: #{tpu_custom_call.1} parent=27 // pred_fallthru
          _
        // Predicated region
        $region33: #{tpu_custom_call.1} parent=27 // pred_check
          %p227 = pneg %p125
        $region34: #{tpu_custom_call.1} parent=27 // pred_check_branch
          %229 = sbr.rel (%p227) target = $region36
        $region35: #{tpu_custom_call.1} parent=27 // pred_region
          %s230 = sand.u32 %s16, 1
          %s231 = scalar_lea.sflag [#allocation3], %s230
          %s232 = sand.u32 %s115, 1
          %s233 = smul.addr %s232, 8
          %s234 = scalar_lea.vmem [#allocation8], %s233
          %s235 = smul.u32 8, %s16
          %237 = vsyncadd %s231, 0
          %s238 = scalar_lea.hbm %s4, %s235
          %s240 = sshll.u32 %s238, 4
          %s241 = int_to_ptr.hbm [resolvable:$true] %s240
          %s242 = sshll.u32 %s234, 4
          %s243 = int_to_ptr.vmem [resolvable:$true] %s242
          %245 = dma.hbm_to_vmem [thread:$0]  %s241, 128, %s243, %s231
        $region36: #{tpu_custom_call.1} parent=27 // pred_fallthru
          _
      $region28: #{tpu_custom_call.1} parent=5 // pred_fallthru
        _
      %p246 = scmp.le.s32.totalorder 1, %s16
      %p247 = scmp.lt.s32.totalorder %s16, 3
      %p248 = pnand %p246, %p247
      %p249 = pneg %p248
      // Predicated region
      $region37: #{tpu_custom_call.1} parent=5 // pred_check
        _
      $region38: #{tpu_custom_call.1} parent=5 // pred_check_branch
        %251 = sbr.rel (%p248) target = $region40
      $region39: #{tpu_custom_call.1} parent=5 // pred_region
        %s252 = ssub.s32 %s16, 1
        // Predicated region
        $region41: #{tpu_custom_call.1} parent=39 // pred_check
          %p253 = pneg %p37
        $region42: #{tpu_custom_call.1} parent=39 // pred_check_branch
          %255 = sbr.rel (%p253) target = $region44
        $region43: #{tpu_custom_call.1} parent=39 // pred_region
          %257 = dma.done [#allocation3], 256
        $region44: #{tpu_custom_call.1} parent=39 // pred_fallthru
          _
        // Predicated region
        $region45: #{tpu_custom_call.1} parent=39 // pred_check
          %p258 = pneg %p58
        $region46: #{tpu_custom_call.1} parent=39 // pred_check_branch
          %260 = sbr.rel (%p258) target = $region48
        $region47: #{tpu_custom_call.1} parent=39 // pred_region
          %262 = dma.done [#allocation6], 4096
        $region48: #{tpu_custom_call.1} parent=39 // pred_fallthru
          _
        %s263 = sand.u32 %s21, 1
        %s264 = scalar_lea.sflag [#allocation3], %s263
        %s265 = sand.u32 %s92, 1
        %s266 = smul.addr %s265, 1024
        %s267 = scalar_lea.vmem [#allocation7], %s266
        // Predicated region
        $region49: #{tpu_custom_call.1} parent=39 // pred_check
          %p268 = pneg %p105
        $region50: #{tpu_custom_call.1} parent=39 // pred_check_branch
          %270 = sbr.rel (%p268) target = $region52
        $region51: #{tpu_custom_call.1} parent=39 // pred_region
          %272 = dma.done %s264, 16384
        $region52: #{tpu_custom_call.1} parent=39 // pred_fallthru
          _
        %s273 = sand.u32 %s21, 1
        %s274 = scalar_lea.sflag [#allocation3], %s273
        %s275 = sand.u32 %s118, 1
        %s276 = smul.addr %s275, 8
        %s277 = scalar_lea.vmem [#allocation8], %s276
        // Predicated region
        $region53: #{tpu_custom_call.1} parent=39 // pred_check
          %p278 = pneg %p131
        $region54: #{tpu_custom_call.1} parent=39 // pred_check_branch
          %280 = sbr.rel (%p278) target = $region56
        $region55: #{tpu_custom_call.1} parent=39 // pred_region
          %282 = dma.done %s274, 128
        $region56: #{tpu_custom_call.1} parent=39 // pred_fallthru
          _
        %p283 = pneg %p37
        %p284 = pneg %p34
        %p285 = pneg %p58
        %p286 = pneg %p55
        %p287 = pneg %p79
        %p288 = pneg %p76
        %s289 = sand.u32 %s21, 1
        %s290 = scalar_lea.sflag [#allocation3], %s289
        %s291 = sand.u32 %s92, 1
        %s292 = smul.addr %s291, 1024
        %s293 = scalar_lea.vmem [#allocation7], %s292
        %p294 = pneg %p105
        %p295 = pneg %p102
        %s296 = sand.u32 %s21, 1
        %s297 = scalar_lea.sflag [#allocation3], %s296
        %s298 = sand.u32 %s118, 1
        %s299 = smul.addr %s298, 8
        %s300 = scalar_lea.vmem [#allocation8], %s299
        %p301 = pneg %p131
        %p302 = pneg %p128
        %p303 = pneg %p157
        %p304 = pneg %p154
        %s305 = sand.u32 %s144, 1
        %s306 = scalar_lea.sflag [#allocation4], %s305
        %s307 = sand.u32 %s144, 1
        %s308 = smul.addr %s307, 64
        %s309 = scalar_lea.vmem [#allocation9], %s308
        %s310 = smul.u32 8, %s21
        %s311 = smul.u32 8, %s21
        %s312 = smul.u32 8, %s21
        %v313 = vld [vmem:[#allocation2] sm:$0xff]
        %v314 = vld [vmem:[#allocation2 + $0x8] sm:$0xff]
        %v315 = vld [vmem:[#allocation5] sm:$0xff]
        %v316 = vld [vmem:[#allocation5 + $0x8] sm:$0xff]
        %v317 = vld [vmem:[#allocation5 + $0x10] sm:$0xff]
        %v318 = vld [vmem:[#allocation5 + $0x18] sm:$0xff]
        %v319 = vld [vmem:[#allocation5 + $0x20] sm:$0xff]
        %v320 = vld [vmem:[#allocation5 + $0x28] sm:$0xff]
        %v321 = vld [vmem:[#allocation5 + $0x30] sm:$0xff]
        %v322 = vld [vmem:[#allocation5 + $0x38] sm:$0xff]
        %v323 = vld [vmem:[#allocation5 + $0x40] sm:$0xff]
        %v324 = vld [vmem:[#allocation5 + $0x48] sm:$0xff]
        %v325 = vld [vmem:[#allocation5 + $0x50] sm:$0xff]
        %v326 = vld [vmem:[#allocation5 + $0x58] sm:$0xff]
        %v327 = vld [vmem:[#allocation5 + $0x60] sm:$0xff]
        %v328 = vld [vmem:[#allocation5 + $0x68] sm:$0xff]
        %v329 = vld [vmem:[#allocation5 + $0x70] sm:$0xff]
        %v330 = vld [vmem:[#allocation5 + $0x78] sm:$0xff]
        %v331 = vld [vmem:[#allocation5 + $0x80] sm:$0xff]
        %v332 = vld [vmem:[#allocation5 + $0x88] sm:$0xff]
        %v333 = vld [vmem:[#allocation5 + $0x90] sm:$0xff]
        %v334 = vld [vmem:[#allocation5 + $0x98] sm:$0xff]
        %v335 = vld [vmem:[#allocation5 + $0xa0] sm:$0xff]
        %v336 = vld [vmem:[#allocation5 + $0xa8] sm:$0xff]
        %v337 = vld [vmem:[#allocation5 + $0xb0] sm:$0xff]
        %v338 = vld [vmem:[#allocation5 + $0xb8] sm:$0xff]
        %v339 = vld [vmem:[#allocation5 + $0xc0] sm:$0xff]
        %v340 = vld [vmem:[#allocation5 + $0xc8] sm:$0xff]
        %v341 = vld [vmem:[#allocation5 + $0xd0] sm:$0xff]
        %v342 = vld [vmem:[#allocation5 + $0xd8] sm:$0xff]
        %v343 = vld [vmem:[#allocation5 + $0xe0] sm:$0xff]
        %v344 = vld [vmem:[#allocation5 + $0xe8] sm:$0xff]
        %v345 = vld [vmem:[#allocation5 + $0xf0] sm:$0xff]
        %v346 = vld [vmem:[#allocation5 + $0xf8] sm:$0xff]
        %v347 = vld [vmem:[%s2] sm:$0x1]
        %v349 = vperm.slane %v347, 0
        %351 = vmatpush.msra.mxu0 %v330
        %352 = vmatpush.msra.mxu0 %v329
        %353 = vmatpush.msra.mxu0 %v328
        %354 = vmatpush.msra.mxu0 %v327
        %355 = vmatpush.msra.mxu0 %v326
        %356 = vmatpush.msra.mxu0 %v325
        %357 = vmatpush.msra.mxu0 %v324
        %358 = vmatpush.msra.mxu0 %v323
        %359 = vmatpush.msra.mxu0 %v322
        %360 = vmatpush.msra.mxu0 %v321
        %361 = vmatpush.msra.mxu0 %v320
        %362 = vmatpush.msra.mxu0 %v319
        %363 = vmatpush.msra.mxu0 %v318
        %364 = vmatpush.msra.mxu0 %v317
        %365 = vmatpush.msra.mxu0 %v316
        %366 = vmatpush.msra.mxu0 %v315
        %367 = vmatmul.f32.gmra.mxu0 %v313
        %v368 = vpop.f32.mrf.mxu0
        %v369 = vadd.f32 %v349, %v368
        %370 = vdwg.mxu0
        %371 = vmatpush.msra.mxu0 %v346
        %372 = vmatpush.msra.mxu0 %v345
        %373 = vmatpush.msra.mxu0 %v344
        %374 = vmatpush.msra.mxu0 %v343
        %375 = vmatpush.msra.mxu0 %v342
        %376 = vmatpush.msra.mxu0 %v341
        %377 = vmatpush.msra.mxu0 %v340
        %378 = vmatpush.msra.mxu0 %v339
        %379 = vmatpush.msra.mxu0 %v338
        %380 = vmatpush.msra.mxu0 %v337
        %381 = vmatpush.msra.mxu0 %v336
        %382 = vmatpush.msra.mxu0 %v335
        %383 = vmatpush.msra.mxu0 %v334
        %384 = vmatpush.msra.mxu0 %v333
        %385 = vmatpush.msra.mxu0 %v332
        %386 = vmatpush.msra.mxu0 %v331
        %387 = vmatmul.f32.gmra.mxu0 %v314
        %v388 = vpop.f32.mrf.mxu0
        %v389 = vadd.f32 %v369, %v388
        %390 = vdwg.mxu0
        %v391 = vmax.f32 %v389, 0.0
        %v392 = vld [vmem:[%s267] sm:$0xff]
        %v393 = vld [vmem:[%s267 + $0x8] sm:$0xff]
        %v394 = vld [vmem:[%s267 + $0x10] sm:$0xff]
        %v395 = vld [vmem:[%s267 + $0x18] sm:$0xff]
        %v396 = vld [vmem:[%s267 + $0x20] sm:$0xff]
        %v397 = vld [vmem:[%s267 + $0x28] sm:$0xff]
        %v398 = vld [vmem:[%s267 + $0x30] sm:$0xff]
        %v399 = vld [vmem:[%s267 + $0x38] sm:$0xff]
        %v400 = vld [vmem:[%s267 + $0x40] sm:$0xff]
        %v401 = vld [vmem:[%s267 + $0x48] sm:$0xff]
        %v402 = vld [vmem:[%s267 + $0x50] sm:$0xff]
        %v403 = vld [vmem:[%s267 + $0x58] sm:$0xff]
        %v404 = vld [vmem:[%s267 + $0x60] sm:$0xff]
        %v405 = vld [vmem:[%s267 + $0x68] sm:$0xff]
        %v406 = vld [vmem:[%s267 + $0x70] sm:$0xff]
        %v407 = vld [vmem:[%s267 + $0x78] sm:$0xff]
        %v408 = vld [vmem:[%s267 + $0x80] sm:$0xff]
        %v409 = vld [vmem:[%s267 + $0x88] sm:$0xff]
        %v410 = vld [vmem:[%s267 + $0x90] sm:$0xff]
        %v411 = vld [vmem:[%s267 + $0x98] sm:$0xff]
        %v412 = vld [vmem:[%s267 + $0xa0] sm:$0xff]
        %v413 = vld [vmem:[%s267 + $0xa8] sm:$0xff]
        %v414 = vld [vmem:[%s267 + $0xb0] sm:$0xff]
        %v415 = vld [vmem:[%s267 + $0xb8] sm:$0xff]
        %v416 = vld [vmem:[%s267 + $0xc0] sm:$0xff]
        %v417 = vld [vmem:[%s267 + $0xc8] sm:$0xff]
        %v418 = vld [vmem:[%s267 + $0xd0] sm:$0xff]
        %v419 = vld [vmem:[%s267 + $0xd8] sm:$0xff]
        %v420 = vld [vmem:[%s267 + $0xe0] sm:$0xff]
        %v421 = vld [vmem:[%s267 + $0xe8] sm:$0xff]
        %v422 = vld [vmem:[%s267 + $0xf0] sm:$0xff]
        %v423 = vld [vmem:[%s267 + $0xf8] sm:$0xff]
        %v424 = vld [vmem:[%s267 + $0x100] sm:$0xff]
        %v425 = vld [vmem:[%s267 + $0x108] sm:$0xff]
        %v426 = vld [vmem:[%s267 + $0x110] sm:$0xff]
        %v427 = vld [vmem:[%s267 + $0x118] sm:$0xff]
        %v428 = vld [vmem:[%s267 + $0x120] sm:$0xff]
        %v429 = vld [vmem:[%s267 + $0x128] sm:$0xff]
        %v430 = vld [vmem:[%s267 + $0x130] sm:$0xff]
        %v431 = vld [vmem:[%s267 + $0x138] sm:$0xff]
        %v432 = vld [vmem:[%s267 + $0x140] sm:$0xff]
        %v433 = vld [vmem:[%s267 + $0x148] sm:$0xff]
        %v434 = vld [vmem:[%s267 + $0x150] sm:$0xff]
        %v435 = vld [vmem:[%s267 + $0x158] sm:$0xff]
        %v436 = vld [vmem:[%s267 + $0x160] sm:$0xff]
        %v437 = vld [vmem:[%s267 + $0x168] sm:$0xff]
        %v438 = vld [vmem:[%s267 + $0x170] sm:$0xff]
        %v439 = vld [vmem:[%s267 + $0x178] sm:$0xff]
        %v440 = vld [vmem:[%s267 + $0x180] sm:$0xff]
        %v441 = vld [vmem:[%s267 + $0x188] sm:$0xff]
        %v442 = vld [vmem:[%s267 + $0x190] sm:$0xff]
        %v443 = vld [vmem:[%s267 + $0x198] sm:$0xff]
        %v444 = vld [vmem:[%s267 + $0x1a0] sm:$0xff]
        %v445 = vld [vmem:[%s267 + $0x1a8] sm:$0xff]
        %v446 = vld [vmem:[%s267 + $0x1b0] sm:$0xff]
        %v447 = vld [vmem:[%s267 + $0x1b8] sm:$0xff]
        %v448 = vld [vmem:[%s267 + $0x1c0] sm:$0xff]
        %v449 = vld [vmem:[%s267 + $0x1c8] sm:$0xff]
        %v450 = vld [vmem:[%s267 + $0x1d0] sm:$0xff]
        %v451 = vld [vmem:[%s267 + $0x1d8] sm:$0xff]
        %v452 = vld [vmem:[%s267 + $0x1e0] sm:$0xff]
        %v453 = vld [vmem:[%s267 + $0x1e8] sm:$0xff]
        %v454 = vld [vmem:[%s267 + $0x1f0] sm:$0xff]
        %v455 = vld [vmem:[%s267 + $0x1f8] sm:$0xff]
        %v456 = vld [vmem:[%s267 + $0x200] sm:$0xff]
        %v457 = vld [vmem:[%s267 + $0x208] sm:$0xff]
        %v458 = vld [vmem:[%s267 + $0x210] sm:$0xff]
        %v459 = vld [vmem:[%s267 + $0x218] sm:$0xff]
        %v460 = vld [vmem:[%s267 + $0x220] sm:$0xff]
        %v461 = vld [vmem:[%s267 + $0x228] sm:$0xff]
        %v462 = vld [vmem:[%s267 + $0x230] sm:$0xff]
        %v463 = vld [vmem:[%s267 + $0x238] sm:$0xff]
        %v464 = vld [vmem:[%s267 + $0x240] sm:$0xff]
        %v465 = vld [vmem:[%s267 + $0x248] sm:$0xff]
        %v466 = vld [vmem:[%s267 + $0x250] sm:$0xff]
        %v467 = vld [vmem:[%s267 + $0x258] sm:$0xff]
        %v468 = vld [vmem:[%s267 + $0x260] sm:$0xff]
        %v469 = vld [vmem:[%s267 + $0x268] sm:$0xff]
        %v470 = vld [vmem:[%s267 + $0x270] sm:$0xff]
        %v471 = vld [vmem:[%s267 + $0x278] sm:$0xff]
        %v472 = vld [vmem:[%s267 + $0x280] sm:$0xff]
        %v473 = vld [vmem:[%s267 + $0x288] sm:$0xff]
        %v474 = vld [vmem:[%s267 + $0x290] sm:$0xff]
        %v475 = vld [vmem:[%s267 + $0x298] sm:$0xff]
        %v476 = vld [vmem:[%s267 + $0x2a0] sm:$0xff]
        %v477 = vld [vmem:[%s267 + $0x2a8] sm:$0xff]
        %v478 = vld [vmem:[%s267 + $0x2b0] sm:$0xff]
        %v479 = vld [vmem:[%s267 + $0x2b8] sm:$0xff]
        %v480 = vld [vmem:[%s267 + $0x2c0] sm:$0xff]
        %v481 = vld [vmem:[%s267 + $0x2c8] sm:$0xff]
        %v482 = vld [vmem:[%s267 + $0x2d0] sm:$0xff]
        %v483 = vld [vmem:[%s267 + $0x2d8] sm:$0xff]
        %v484 = vld [vmem:[%s267 + $0x2e0] sm:$0xff]
        %v485 = vld [vmem:[%s267 + $0x2e8] sm:$0xff]
        %v486 = vld [vmem:[%s267 + $0x2f0] sm:$0xff]
        %v487 = vld [vmem:[%s267 + $0x2f8] sm:$0xff]
        %v488 = vld [vmem:[%s267 + $0x300] sm:$0xff]
        %v489 = vld [vmem:[%s267 + $0x308] sm:$0xff]
        %v490 = vld [vmem:[%s267 + $0x310] sm:$0xff]
        %v491 = vld [vmem:[%s267 + $0x318] sm:$0xff]
        %v492 = vld [vmem:[%s267 + $0x320] sm:$0xff]
        %v493 = vld [vmem:[%s267 + $0x328] sm:$0xff]
        %v494 = vld [vmem:[%s267 + $0x330] sm:$0xff]
        %v495 = vld [vmem:[%s267 + $0x338] sm:$0xff]
        %v496 = vld [vmem:[%s267 + $0x340] sm:$0xff]
        %v497 = vld [vmem:[%s267 + $0x348] sm:$0xff]
        %v498 = vld [vmem:[%s267 + $0x350] sm:$0xff]
        %v499 = vld [vmem:[%s267 + $0x358] sm:$0xff]
        %v500 = vld [vmem:[%s267 + $0x360] sm:$0xff]
        %v501 = vld [vmem:[%s267 + $0x368] sm:$0xff]
        %v502 = vld [vmem:[%s267 + $0x370] sm:$0xff]
        %v503 = vld [vmem:[%s267 + $0x378] sm:$0xff]
        %v504 = vld [vmem:[%s267 + $0x380] sm:$0xff]
        %v505 = vld [vmem:[%s267 + $0x388] sm:$0xff]
        %v506 = vld [vmem:[%s267 + $0x390] sm:$0xff]
        %v507 = vld [vmem:[%s267 + $0x398] sm:$0xff]
        %v508 = vld [vmem:[%s267 + $0x3a0] sm:$0xff]
        %v509 = vld [vmem:[%s267 + $0x3a8] sm:$0xff]
        %v510 = vld [vmem:[%s267 + $0x3b0] sm:$0xff]
        %v511 = vld [vmem:[%s267 + $0x3b8] sm:$0xff]
        %v512 = vld [vmem:[%s267 + $0x3c0] sm:$0xff]
        %v513 = vld [vmem:[%s267 + $0x3c8] sm:$0xff]
        %v514 = vld [vmem:[%s267 + $0x3d0] sm:$0xff]
        %v515 = vld [vmem:[%s267 + $0x3d8] sm:$0xff]
        %v516 = vld [vmem:[%s267 + $0x3e0] sm:$0xff]
        %v517 = vld [vmem:[%s267 + $0x3e8] sm:$0xff]
        %v518 = vld [vmem:[%s267 + $0x3f0] sm:$0xff]
        %v519 = vld [vmem:[%s267 + $0x3f8] sm:$0xff]
        %v520 = vld [vmem:[%s277] sm:$0xff]
        %v522 = vperm.slane %v520, 0
        %v523 = vperm.slane %v520, 1
        %v524 = vperm.slane %v520, 2
        %v525 = vperm.slane %v520, 3
        %v526 = vperm.slane %v520, 4
        %v527 = vperm.slane %v520, 5
        %v528 = vperm.slane %v520, 6
        %v529 = vperm.slane %v520, 7
        %538 = vmatpush.msra.mxu0 %v512
        %539 = vmatpush.msra.mxu0 %v504
        %540 = vmatpush.msra.mxu0 %v496
        %541 = vmatpush.msra.mxu0 %v488
        %542 = vmatpush.msra.mxu0 %v480
        %543 = vmatpush.msra.mxu0 %v472
        %544 = vmatpush.msra.mxu0 %v464
        %545 = vmatpush.msra.mxu0 %v456
        %546 = vmatpush.msra.mxu0 %v448
        %547 = vmatpush.msra.mxu0 %v440
        %548 = vmatpush.msra.mxu0 %v432
        %549 = vmatpush.msra.mxu0 %v424
        %550 = vmatpush.msra.mxu0 %v416
        %551 = vmatpush.msra.mxu0 %v408
        %552 = vmatpush.msra.mxu0 %v400
        %553 = vmatpush.msra.mxu0 %v392
        %554 = vmatmul.f32.gmra.mxu0 %v391
        %v555 = vpop.f32.mrf.mxu0
        %v556 = vadd.f32 %v522, %v555
        %557 = vdwg.mxu0
        %558 = vmatpush.msra.mxu0 %v513
        %559 = vmatpush.msra.mxu0 %v505
        %560 = vmatpush.msra.mxu0 %v497
        %561 = vmatpush.msra.mxu0 %v489
        %562 = vmatpush.msra.mxu0 %v481
        %563 = vmatpush.msra.mxu0 %v473
        %564 = vmatpush.msra.mxu0 %v465
        %565 = vmatpush.msra.mxu0 %v457
        %566 = vmatpush.msra.mxu0 %v449
        %567 = vmatpush.msra.mxu0 %v441
        %568 = vmatpush.msra.mxu0 %v433
        %569 = vmatpush.msra.mxu0 %v425
        %570 = vmatpush.msra.mxu0 %v417
        %571 = vmatpush.msra.mxu0 %v409
        %572 = vmatpush.msra.mxu0 %v401
        %573 = vmatpush.msra.mxu0 %v393
        %574 = vmatmul.f32.gmra.mxu0 %v391
        %v575 = vpop.f32.mrf.mxu0
        %v576 = vadd.f32 %v523, %v575
        %577 = vdwg.mxu0
        %578 = vmatpush.msra.mxu0 %v514
        %579 = vmatpush.msra.mxu0 %v506
        %580 = vmatpush.msra.mxu0 %v498
        %581 = vmatpush.msra.mxu0 %v490
        %582 = vmatpush.msra.mxu0 %v482
        %583 = vmatpush.msra.mxu0 %v474
        %584 = vmatpush.msra.mxu0 %v466
        %585 = vmatpush.msra.mxu0 %v458
        %586 = vmatpush.msra.mxu0 %v450
        %587 = vmatpush.msra.mxu0 %v442
        %588 = vmatpush.msra.mxu0 %v434
        %589 = vmatpush.msra.mxu0 %v426
        %590 = vmatpush.msra.mxu0 %v418
        %591 = vmatpush.msra.mxu0 %v410
        %592 = vmatpush.msra.mxu0 %v402
        %593 = vmatpush.msra.mxu0 %v394
        %594 = vmatmul.f32.gmra.mxu0 %v391
        %v595 = vpop.f32.mrf.mxu0
        %v596 = vadd.f32 %v524, %v595
        %597 = vdwg.mxu0
        %598 = vmatpush.msra.mxu0 %v515
        %599 = vmatpush.msra.mxu0 %v507
        %600 = vmatpush.msra.mxu0 %v499
        %601 = vmatpush.msra.mxu0 %v491
        %602 = vmatpush.msra.mxu0 %v483
        %603 = vmatpush.msra.mxu0 %v475
        %604 = vmatpush.msra.mxu0 %v467
        %605 = vmatpush.msra.mxu0 %v459
        %606 = vmatpush.msra.mxu0 %v451
        %607 = vmatpush.msra.mxu0 %v443
        %608 = vmatpush.msra.mxu0 %v435
        %609 = vmatpush.msra.mxu0 %v427
        %610 = vmatpush.msra.mxu0 %v419
        %611 = vmatpush.msra.mxu0 %v411
        %612 = vmatpush.msra.mxu0 %v403
        %613 = vmatpush.msra.mxu0 %v395
        %614 = vmatmul.f32.gmra.mxu0 %v391
        %v615 = vpop.f32.mrf.mxu0
        %v616 = vadd.f32 %v525, %v615
        %617 = vdwg.mxu0
        %618 = vmatpush.msra.mxu0 %v516
        %619 = vmatpush.msra.mxu0 %v508
        %620 = vmatpush.msra.mxu0 %v500
        %621 = vmatpush.msra.mxu0 %v492
        %622 = vmatpush.msra.mxu0 %v484
        %623 = vmatpush.msra.mxu0 %v476
        %624 = vmatpush.msra.mxu0 %v468
        %625 = vmatpush.msra.mxu0 %v460
        %626 = vmatpush.msra.mxu0 %v452
        %627 = vmatpush.msra.mxu0 %v444
        %628 = vmatpush.msra.mxu0 %v436
        %629 = vmatpush.msra.mxu0 %v428
        %630 = vmatpush.msra.mxu0 %v420
        %631 = vmatpush.msra.mxu0 %v412
        %632 = vmatpush.msra.mxu0 %v404
        %633 = vmatpush.msra.mxu0 %v396
        %634 = vmatmul.f32.gmra.mxu0 %v391
        %v635 = vpop.f32.mrf.mxu0
        %v636 = vadd.f32 %v526, %v635
        %637 = vdwg.mxu0
        %638 = vmatpush.msra.mxu0 %v517
        %639 = vmatpush.msra.mxu0 %v509
        %640 = vmatpush.msra.mxu0 %v501
        %641 = vmatpush.msra.mxu0 %v493
        %642 = vmatpush.msra.mxu0 %v485
        %643 = vmatpush.msra.mxu0 %v477
        %644 = vmatpush.msra.mxu0 %v469
        %645 = vmatpush.msra.mxu0 %v461
        %646 = vmatpush.msra.mxu0 %v453
        %647 = vmatpush.msra.mxu0 %v445
        %648 = vmatpush.msra.mxu0 %v437
        %649 = vmatpush.msra.mxu0 %v429
        %650 = vmatpush.msra.mxu0 %v421
        %651 = vmatpush.msra.mxu0 %v413
        %652 = vmatpush.msra.mxu0 %v405
        %653 = vmatpush.msra.mxu0 %v397
        %654 = vmatmul.f32.gmra.mxu0 %v391
        %v655 = vpop.f32.mrf.mxu0
        %v656 = vadd.f32 %v527, %v655
        %657 = vdwg.mxu0
        %658 = vmatpush.msra.mxu0 %v518
        %659 = vmatpush.msra.mxu0 %v510
        %660 = vmatpush.msra.mxu0 %v502
        %661 = vmatpush.msra.mxu0 %v494
        %662 = vmatpush.msra.mxu0 %v486
        %663 = vmatpush.msra.mxu0 %v478
        %664 = vmatpush.msra.mxu0 %v470
        %665 = vmatpush.msra.mxu0 %v462
        %666 = vmatpush.msra.mxu0 %v454
        %667 = vmatpush.msra.mxu0 %v446
        %668 = vmatpush.msra.mxu0 %v438
        %669 = vmatpush.msra.mxu0 %v430
        %670 = vmatpush.msra.mxu0 %v422
        %671 = vmatpush.msra.mxu0 %v414
        %672 = vmatpush.msra.mxu0 %v406
        %673 = vmatpush.msra.mxu0 %v398
        %674 = vmatmul.f32.gmra.mxu0 %v391
        %v675 = vpop.f32.mrf.mxu0
        %v676 = vadd.f32 %v528, %v675
        %677 = vdwg.mxu0
        %678 = vmatpush.msra.mxu0 %v519
        %679 = vmatpush.msra.mxu0 %v511
        %680 = vmatpush.msra.mxu0 %v503
        %681 = vmatpush.msra.mxu0 %v495
        %682 = vmatpush.msra.mxu0 %v487
        %683 = vmatpush.msra.mxu0 %v479
        %684 = vmatpush.msra.mxu0 %v471
        %685 = vmatpush.msra.mxu0 %v463
        %686 = vmatpush.msra.mxu0 %v455
        %687 = vmatpush.msra.mxu0 %v447
        %688 = vmatpush.msra.mxu0 %v439
        %689 = vmatpush.msra.mxu0 %v431
        %690 = vmatpush.msra.mxu0 %v423
        %691 = vmatpush.msra.mxu0 %v415
        %692 = vmatpush.msra.mxu0 %v407
        %693 = vmatpush.msra.mxu0 %v399
        %694 = vmatmul.f32.gmra.mxu0 %v391
        %v695 = vpop.f32.mrf.mxu0
        %v696 = vadd.f32 %v529, %v695
        %697 = vdwg.mxu0
        %p698 = scmp.eq.s32.totalorder %s21, 0
        // Predicated region
        $region57: #{tpu_custom_call.1} parent=39 // pred_check
          %p699 = pneg %p698
        $region58: #{tpu_custom_call.1} parent=39 // pred_check_branch
          %701 = sbr.rel (%p699) target = $region60
        $region59: #{tpu_custom_call.1} parent=39 // pred_region
          %v702 = vmax.f32 %v556, 0.0
          %v703 = vmax.f32 %v576, 0.0
          %v704 = vmax.f32 %v596, 0.0
          %v705 = vmax.f32 %v616, 0.0
          %v706 = vand.u32 2147483647, %v556
          %v707 = vand.u32 2147483647, %v576
          %v708 = vand.u32 2147483647, %v596
          %v709 = vand.u32 2147483647, %v616
          %v710 = vsub.f32 0.0, %v706
          %v711 = vsub.f32 0.0, %v707
          %v712 = vsub.f32 0.0, %v708
          %v713 = vsub.f32 0.0, %v709
          %v714 = vmul.f32 %v710, 1.442695
          %v715 = vpow.pop %v714
          %v716 = vmul.f32 %v711, 1.442695
          %v717 = vpow.pop %v716
          %v718 = vmul.f32 %v712, 1.442695
          %v719 = vpow.pop %v718
          %v720 = vmul.f32 %v713, 1.442695
          %v721 = vpow.pop %v720
          %v722 = vadd.f32 %v715, 1.0
          %v723 = vlog2.pop %v722
          %v724 = vmul.f32 %v723, 0.6931472
          %v725 = vmul.f32 -0.5, %v715
          %v726 = vadd.f32 %v725, 1.0
          %v727 = vmul.f32 %v726, %v715
          %v728 = vand.u32 2147483647, %v715
          %vm729 = vcmp.lt.f32.partialorder %v728, 0.0004427343
          %v730 = vsel %vm729, %v727, %v724
          %v731 = vadd.f32 %v717, 1.0
          %v732 = vlog2.pop %v731
          %v733 = vmul.f32 %v732, 0.6931472
          %v734 = vmul.f32 -0.5, %v717
          %v735 = vadd.f32 %v734, 1.0
          %v736 = vmul.f32 %v735, %v717
          %v737 = vand.u32 2147483647, %v717
          %vm738 = vcmp.lt.f32.partialorder %v737, 0.0004427343
          %v739 = vsel %vm738, %v736, %v733
          %v740 = vadd.f32 %v719, 1.0
          %v741 = vlog2.pop %v740
          %v742 = vmul.f32 %v741, 0.6931472
          %v743 = vmul.f32 -0.5, %v719
          %v744 = vadd.f32 %v743, 1.0
          %v745 = vmul.f32 %v744, %v719
          %v746 = vand.u32 2147483647, %v719
          %vm747 = vcmp.lt.f32.partialorder %v746, 0.0004427343
          %v748 = vsel %vm747, %v745, %v742
          %v749 = vadd.f32 %v721, 1.0
          %v750 = vlog2.pop %v749
          %v751 = vmul.f32 %v750, 0.6931472
          %v752 = vmul.f32 -0.5, %v721
          %v753 = vadd.f32 %v752, 1.0
          %v754 = vmul.f32 %v753, %v721
          %v755 = vand.u32 2147483647, %v721
          %vm756 = vcmp.lt.f32.partialorder %v755, 0.0004427343
          %v757 = vsel %vm756, %v754, %v751
          %v758 = vadd.f32 %v702, %v730
          %v759 = vadd.f32 %v703, %v739
          %v760 = vadd.f32 %v704, %v748
          %v761 = vadd.f32 %v705, %v757
          %762 = vst [vmem:[%s309] sm:$0xff] %v758
          %763 = vst [vmem:[%s309 + $0x8] sm:$0xff] %v759
          %764 = vst [vmem:[%s309 + $0x10] sm:$0xff] %v760
          %765 = vst [vmem:[%s309 + $0x18] sm:$0xff] %v761
          %766 = vst [vmem:[%s309 + $0x20] sm:$0xff] %v636
          %767 = vst [vmem:[%s309 + $0x28] sm:$0xff] %v656
          %768 = vst [vmem:[%s309 + $0x30] sm:$0xff] %v676
          %769 = vst [vmem:[%s309 + $0x38] sm:$0xff] %v696
        $region60: #{tpu_custom_call.1} parent=39 // pred_fallthru
          _
        %p770 = scmp.ge.s32.totalorder %s21, 1
        // Predicated region
        $region61: #{tpu_custom_call.1} parent=39 // pred_check
          %p771 = pneg %p770
        $region62: #{tpu_custom_call.1} parent=39 // pred_check_branch
          %773 = sbr.rel (%p771) target = $region64
        $region63: #{tpu_custom_call.1} parent=39 // pred_region
          %774 = vst [vmem:[%s309] sm:$0xff] %v556
          %775 = vst [vmem:[%s309 + $0x8] sm:$0xff] %v576
          %776 = vst [vmem:[%s309 + $0x10] sm:$0xff] %v596
          %777 = vst [vmem:[%s309 + $0x18] sm:$0xff] %v616
          %778 = vst [vmem:[%s309 + $0x20] sm:$0xff] %v636
          %779 = vst [vmem:[%s309 + $0x28] sm:$0xff] %v656
          %780 = vst [vmem:[%s309 + $0x30] sm:$0xff] %v676
          %781 = vst [vmem:[%s309 + $0x38] sm:$0xff] %v696
        $region64: #{tpu_custom_call.1} parent=39 // pred_fallthru
          _
        %s782 = sand.u32 %s144, 1
        %s783 = scalar_lea.sflag [#allocation4], %s782
        %s784 = sand.u32 %s144, 1
        %s785 = smul.addr %s784, 64
        %s786 = scalar_lea.vmem [#allocation9], %s785
        // Predicated region
        $region65: #{tpu_custom_call.1} parent=39 // pred_check
          %p787 = pneg %p154
        $region66: #{tpu_custom_call.1} parent=39 // pred_check_branch
          %789 = sbr.rel (%p787) target = $region68
        $region67: #{tpu_custom_call.1} parent=39 // pred_region
          %s790 = smul.u32 8, %s21
          %792 = vsyncadd %s783, 0
          %s793 = smul.addr %s790, 8
          %s794 = scalar_lea.hbm %s5, %s793
          %s796 = sshll.u32 %s786, 4
          %s797 = int_to_ptr.vmem [resolvable:$true] %s796
          %s798 = sshll.u32 %s794, 4
          %s799 = int_to_ptr.hbm [resolvable:$true] %s798
          %801 = dma.vmem_to_hbm [thread:$0]  %s797, 1024, %s799, %s783
        $region68: #{tpu_custom_call.1} parent=39 // pred_fallthru
          _
      $region40: #{tpu_custom_call.1} parent=5 // pred_fallthru
        _
      %p802 = scmp.le.s32.totalorder 2, %s16
      // Predicated region
      $region69: #{tpu_custom_call.1} parent=5 // pred_check
        %p803 = pneg %p802
      $region70: #{tpu_custom_call.1} parent=5 // pred_check_branch
        %805 = sbr.rel (%p803) target = $region72
      $region71: #{tpu_custom_call.1} parent=5 // pred_region
        %s806 = ssub.s32 %s16, 2
        // Predicated region
        $region73: #{tpu_custom_call.1} parent=71 // pred_check
          %p807 = pneg %p160
        $region74: #{tpu_custom_call.1} parent=71 // pred_check_branch
          %809 = sbr.rel (%p807) target = $region76
        $region75: #{tpu_custom_call.1} parent=71 // pred_region
          %s810 = sand.u32 %s145, 1
          %s811 = scalar_lea.sflag [#allocation4], %s810
          %s812 = sand.u32 %s145, 1
          %s813 = smul.addr %s812, 64
          %s814 = scalar_lea.vmem [#allocation9], %s813
          %816 = dma.done %s811, 1024
        $region76: #{tpu_custom_call.1} parent=71 // pred_fallthru
          _
      $region72: #{tpu_custom_call.1} parent=5 // pred_fallthru
        _
    $region6: #{tpu_custom_call.1} parent=1 // loop_footer
      %s20 = sadd.s32 1, %s16
    $region7: #{tpu_custom_call.1} parent=1 // loop_footer_branch
      %15 = sbr.rel target = $region3
    $region8: #{tpu_custom_call.1} parent=1 // loop_exit
      _
    %817 = vsyncpa [#allocation3], 1
    %s818 = scalar_lea.sflag [#allocation3], 1
    %819 = vsyncpa %s818, 1
    %820 = vsyncpa [#allocation6], 1
    %821 = vsyncpa [#allocation4], 1
    %s822 = scalar_lea.sflag [#allocation4], 1
    %823 = vsyncpa %s822, 1

</llo_original>
